<compile_context>
chip_gen: v7x
topology: tpu7x:2x2x1
jax: 0.10.0
libtpu: 0.0.40
codegen_flags: <defaults>
</compile_context>

<pallas_src>
import jax
import jax.numpy as jnp
from jax.experimental import pallas as pl
from jax.experimental.pallas import tpu as pltpu

F_PAD = 16      # all layer widths (10, 5, 5, 1) zero-padded to 16 sublanes
TILE_B = 512    # max batch rows per grid step (lane axis, multiple of 128)


def _mlp_kernel(x_ref, w_ref, b_ref, o_ref):
    """x_ref: [F_PAD, tile_b]; w_ref: [3, F_PAD, F_PAD]; b_ref: [3, F_PAD, 1];
    o_ref: [1, tile_b].  Lane-major: batch on the lane axis."""
    x = x_ref[...]                                       # [F_PAD, tile_b]
    # Layer 1: Linear + ReLU   (padded rows stay exactly 0: relu(0 + 0) = 0)
    h1 = jnp.maximum(
        jnp.dot(w_ref[0], x, preferred_element_type=jnp.float32) + b_ref[0],
        0.0)
    # Layer 2: Linear + ReLU
    h2 = jnp.maximum(
        jnp.dot(w_ref[1], h1, preferred_element_type=jnp.float32) + b_ref[1],
        0.0)
    # Output layer: Linear (no activation); only row 0 is the real output.
    y = jnp.dot(w_ref[2], h2, preferred_element_type=jnp.float32) + b_ref[2]
    o_ref[...] = y[0:1, :].astype(o_ref.dtype)


def pack_params(params):
    """Pack [(W [out,in], b [out]), ...] (PyTorch layout) into two padded,
    contiguous arrays: weights [n_layers, F_PAD, F_PAD], biases [n_layers,
    F_PAD, 1].  Padding is zero, which preserves the exact forward math."""
    n = len(params)
    w_packed = jnp.zeros((n, F_PAD, F_PAD), jnp.float32)
    b_packed = jnp.zeros((n, F_PAD, 1), jnp.float32)
    for i, (w, b) in enumerate(params):
        out_f, in_f = w.shape
        assert out_f <= F_PAD and in_f <= F_PAD, "layer width exceeds F_PAD"
        w_packed = w_packed.at[i, :out_f, :in_f].set(w.astype(jnp.float32))
        b_packed = b_packed.at[i, :out_f, 0].set(b.astype(jnp.float32))
    return w_packed, b_packed


def mlp_forward(x, params, *, tile_b=TILE_B):
    """x: [B, 10] (or [10] for the module's single-vector call).
    params: list of (W [out,in], b [out]) in PyTorch layout.
    Returns [B, 1] float32."""
    if x.ndim == 1:
        x = x[None, :]
    batch, in_dim = x.shape
    out_dim = params[-1][0].shape[0]

    # Adaptive tile: never pad a small batch past the next multiple of 128.
    tile_b = min(tile_b, max(128, ((batch + 127) // 128) * 128))
    n_tiles = pl.cdiv(batch, tile_b)
    b_padded = n_tiles * tile_b

    # Lane-major, zero-padded input slab: [F_PAD, b_padded].
    xt = jnp.zeros((F_PAD, b_padded), jnp.float32)
    xt = xt.at[:in_dim, :batch].set(x.T.astype(jnp.float32))

    w_packed, b_packed = pack_params(params)

    out_t = pl.pallas_call(
        _mlp_kernel,
        out_shape=jax.ShapeDtypeStruct((1, b_padded), jnp.float32),
        grid=(n_tiles,),
        in_specs=[
            # Activations stream over the batch grid axis.
            pl.BlockSpec((F_PAD, tile_b), lambda i: (0, i)),
            # Parameters: constant index_map -> DMA'd once, VMEM-resident.
            pl.BlockSpec(w_packed.shape, lambda i: (0, 0, 0)),
            pl.BlockSpec(b_packed.shape, lambda i: (0, 0, 0)),
        ],
        out_specs=pl.BlockSpec((1, tile_b), lambda i: (0, i)),
        compiler_params=pltpu.CompilerParams(
            dimension_semantics=("parallel",)),
    )(xt, w_packed, b_packed)

    return out_t[0, :batch].reshape(batch, out_dim)


def init_params(key, layer_sizes):
    """Deterministic PyTorch-style init: W [out,in], b [out], both
    U(-1/sqrt(fan_in), 1/sqrt(fan_in))."""
    params = []
    for i in range(len(layer_sizes) - 1):
        fan_in, fan_out = layer_sizes[i], layer_sizes[i + 1]
        key, kw, kb = jax.random.split(key, 3)
        bound = 1.0 / float(fan_in) ** 0.5
        w = jax.random.uniform(kw, (fan_out, fan_in), jnp.float32,
                               minval=-bound, maxval=bound)
        b = jax.random.uniform(kb, (fan_out,), jnp.float32,
                               minval=-bound, maxval=bound)
        params.append((w, b))
    return params


def _reference(x2d, params):
    """Pure-JAX reference (same math as the PyTorch module)."""
    h = x2d
    for (w, b) in params[:-1]:
        h = jnp.maximum(h @ w.T + b, 0.0)
    w, b = params[-1]
    return h @ w.T + b


if __name__ == "__main__":
    input_dim = 10
    hidden_layers = [5, 5]
    output_dim = 1
    layer_sizes = [input_dim] + hidden_layers + [output_dim]

    key = jax.random.PRNGKey(0)
    key, kx, kxb, kxm = jax.random.split(key, 4)

    params = init_params(key, layer_sizes)

    # 1) Single-vector forward, matching the original module: x = torch.randn(10)
    x_vec = jax.random.normal(kx, (input_dim,), jnp.float32)
    y_single = jax.block_until_ready(mlp_forward(x_vec, params))

    # 2) Small batched forward (single lane-dense tile).
    batch = 256
    x_batch = jax.random.normal(kxb, (batch, input_dim), jnp.float32)
    y_batch = jax.block_until_ready(mlp_forward(x_batch, params))

    # 3) Multi-tile batched forward (exercises the streamed grid: 2 tiles of 512).
    batch_m = 640
    x_multi = jax.random.normal(kxm, (batch_m, input_dim), jnp.float32)
    y_multi = jax.block_until_ready(mlp_forward(x_multi, params))

    y_single_ref = _reference(x_vec[None, :], params)
    y_batch_ref = _reference(x_batch, params)
    y_multi_ref = _reference(x_multi, params)

    assert y_single.shape == (1, output_dim)
    assert y_batch.shape == (batch, output_dim)
    assert y_multi.shape == (batch_m, output_dim)
    assert jnp.allclose(y_single, y_single_ref, atol=1e-5, rtol=1e-5)
    assert jnp.allclose(y_batch, y_batch_ref, atol=1e-5, rtol=1e-5)
    assert jnp.allclose(y_multi, y_multi_ref, atol=1e-5, rtol=1e-5)

    print("KERNEL_OK")
</pallas_src>

<mosaic_0001>
module attributes {stable_mosaic.version = 11 : i64} {
  func.func @_mlp_kernel(%arg0: i32, %arg1: memref<16x128xf32, #tpu.memory_space<vmem>>, %arg2: memref<3x16x16xf32, #tpu.memory_space<vmem>>, %arg3: memref<3x16x1xf32, #tpu.memory_space<vmem>>, %arg4: memref<1x128xf32, #tpu.memory_space<vmem>>) attributes {dimension_semantics = [#tpu.dimension_semantics<parallel>], iteration_bounds = array<i64: 1>, scalar_prefetch = 0 : i64, scratch_operands = 0 : i64, tpu.core_type = #tpu.core_type<tc>, window_params = [{transform_indices = @transform_0, window_bounds = array<i64: 16, 128>}, {pipeline_mode = #tpu.pipeline_mode<synchronous>, transform_indices = @transform_1, window_bounds = array<i64: 3, 16, 16>}, {pipeline_mode = #tpu.pipeline_mode<synchronous>, transform_indices = @transform_2, window_bounds = array<i64: 3, 16, 1>}, {transform_indices = @transform_3, window_bounds = array<i64: 1, 128>}]} {
    %c0 = arith.constant 0 : index
    %c0_0 = arith.constant 0 : index
    %0 = vector.load %arg1[%c0, %c0_0] : memref<16x128xf32, #tpu.memory_space<vmem>>, vector<16x128xf32>
    %c0_1 = arith.constant 0 : index
    %c0_2 = arith.constant 0 : index
    %c0_3 = arith.constant 0 : index
    %1 = vector.load %arg2[%c0_1, %c0_2, %c0_3] : memref<3x16x16xf32, #tpu.memory_space<vmem>>, vector<1x16x16xf32>
    %2 = vector.shape_cast %1 : vector<1x16x16xf32> to vector<16x16xf32>
    %cst = arith.constant dense<0.000000e+00> : vector<16x128xf32>
    %3 = tpu.matmul %2, %0, %cst {dimension_numbers = #tpu.dot_dimension_numbers<[1], [0], [0], [1], [0, 0, 1, 1], [], []>} : vector<16x16xf32>, vector<16x128xf32>, vector<16x128xf32> -> vector<16x128xf32>
    %c0_4 = arith.constant 0 : index
    %c0_5 = arith.constant 0 : index
    %c0_6 = arith.constant 0 : index
    %4 = vector.load %arg3[%c0_4, %c0_5, %c0_6] : memref<3x16x1xf32, #tpu.memory_space<vmem>>, vector<1x16x1xf32>
    %5 = vector.shape_cast %4 : vector<1x16x1xf32> to vector<16x1xf32>
    %6 = vector.broadcast %5 : vector<16x1xf32> to vector<16x128xf32>
    %7 = arith.addf %3, %6 : vector<16x128xf32>
    %cst_7 = arith.constant 0.000000e+00 : f32
    %8 = vector.broadcast %cst_7 : f32 to vector<16x128xf32>
    %9 = arith.maximumf %7, %8 : vector<16x128xf32>
    %c1 = arith.constant 1 : index
    %c0_8 = arith.constant 0 : index
    %c0_9 = arith.constant 0 : index
    %10 = vector.load %arg2[%c1, %c0_8, %c0_9] : memref<3x16x16xf32, #tpu.memory_space<vmem>>, vector<1x16x16xf32>
    %11 = vector.shape_cast %10 : vector<1x16x16xf32> to vector<16x16xf32>
    %cst_10 = arith.constant dense<0.000000e+00> : vector<16x128xf32>
    %12 = tpu.matmul %11, %9, %cst_10 {dimension_numbers = #tpu.dot_dimension_numbers<[1], [0], [0], [1], [0, 0, 1, 1], [], []>} : vector<16x16xf32>, vector<16x128xf32>, vector<16x128xf32> -> vector<16x128xf32>
    %c1_11 = arith.constant 1 : index
    %c0_12 = arith.constant 0 : index
    %c0_13 = arith.constant 0 : index
    %13 = vector.load %arg3[%c1_11, %c0_12, %c0_13] : memref<3x16x1xf32, #tpu.memory_space<vmem>>, vector<1x16x1xf32>
    %14 = vector.shape_cast %13 : vector<1x16x1xf32> to vector<16x1xf32>
    %15 = vector.broadcast %14 : vector<16x1xf32> to vector<16x128xf32>
    %16 = arith.addf %12, %15 : vector<16x128xf32>
    %cst_14 = arith.constant 0.000000e+00 : f32
    %17 = vector.broadcast %cst_14 : f32 to vector<16x128xf32>
    %18 = arith.maximumf %16, %17 : vector<16x128xf32>
    %c2 = arith.constant 2 : index
    %c0_15 = arith.constant 0 : index
    %c0_16 = arith.constant 0 : index
    %19 = vector.load %arg2[%c2, %c0_15, %c0_16] : memref<3x16x16xf32, #tpu.memory_space<vmem>>, vector<1x16x16xf32>
    %20 = vector.shape_cast %19 : vector<1x16x16xf32> to vector<16x16xf32>
    %cst_17 = arith.constant dense<0.000000e+00> : vector<16x128xf32>
    %21 = tpu.matmul %20, %18, %cst_17 {dimension_numbers = #tpu.dot_dimension_numbers<[1], [0], [0], [1], [0, 0, 1, 1], [], []>} : vector<16x16xf32>, vector<16x128xf32>, vector<16x128xf32> -> vector<16x128xf32>
    %c2_18 = arith.constant 2 : index
    %c0_19 = arith.constant 0 : index
    %c0_20 = arith.constant 0 : index
    %22 = vector.load %arg3[%c2_18, %c0_19, %c0_20] : memref<3x16x1xf32, #tpu.memory_space<vmem>>, vector<1x16x1xf32>
    %23 = vector.shape_cast %22 : vector<1x16x1xf32> to vector<16x1xf32>
    %24 = vector.broadcast %23 : vector<16x1xf32> to vector<16x128xf32>
    %25 = arith.addf %21, %24 : vector<16x128xf32>
    %26 = vector.extract_strided_slice %25 {offsets = [0, 0], sizes = [1, 128], strides = [1, 1]} : vector<16x128xf32> to vector<1x128xf32>
    %c0_21 = arith.constant 0 : index
    %c0_22 = arith.constant 0 : index
    %27 = vector.load %arg4[%c0_21, %c0_22] : memref<1x128xf32, #tpu.memory_space<vmem>>, vector<1x128xf32>
    tpu.vector_store %arg4[%c0_21, %c0_22], %26 {strides = array<i32>} : memref<1x128xf32, #tpu.memory_space<vmem>>, vector<1x128xf32>,
    return
  }
  func.func @transform_0(%arg0: i32) -> (i32, i32) {
    %c0_i32 = arith.constant 0 : i32
    %c0_i32_0 = arith.constant 0 : i32
    return %c0_i32, %arg0 : i32, i32
  }
  func.func @transform_1(%arg0: i32) -> (i32, i32, i32) {
    %c0_i32 = arith.constant 0 : i32
    %c0_i32_0 = arith.constant 0 : i32
    %c0_i32_1 = arith.constant 0 : i32
    %c0_i32_2 = arith.constant 0 : i32
    return %c0_i32, %c0_i32_0, %c0_i32_1 : i32, i32, i32
  }
  func.func @transform_2(%arg0: i32) -> (i32, i32, i32) {
    %c0_i32 = arith.constant 0 : i32
    %c0_i32_0 = arith.constant 0 : i32
    %c0_i32_1 = arith.constant 0 : i32
    %c0_i32_2 = arith.constant 0 : i32
    return %c0_i32, %c0_i32_0, %c0_i32_1 : i32, i32, i32
  }
  func.func @transform_3(%arg0: i32) -> (i32, i32) {
    %c0_i32 = arith.constant 0 : i32
    %c0_i32_0 = arith.constant 0 : i32
    return %c0_i32, %arg0 : i32, i32
  }
}

</mosaic_0001>

<llo_original>
// kernel: tpu_custom_call.1
$region0: #{tpu_custom_call.1}
  #allocation0 [shape = 'u32[]', space=smem, size = 0x4, offset = 0x4, fixed_abs, tag = 'smem constant byte address 0x4 - core index']
  #allocation1 [shape = 'u32[144,128]{1,0:T(1,128)}', space=vmem, size = 0x12000, scoped, tag = 'internal scratch']
  %s0 = inlined_call_operand.hbm [shape: f32[16,128], index: 0, kind: input, shape index: {}]
  %s1 = inlined_call_operand.vmem [shape: f32[3,16,16], index: 1, kind: input, shape index: {}]
  %s2 = inlined_call_operand.vmem [shape: f32[3,16,1], index: 2, kind: input, shape index: {}]
  %s3 = inlined_call_operand.hbm [shape: f32[1,128], index: 3, kind: output, shape index: {}]
  %s4 = sld [smem:[#allocation0]]
  $region26: #{tpu_custom_call.1} parent=0
    _
  %s6 = ssub.s32 1, %s4
  %s7 = scalar_select 0, %s6, %s4
  $region1: #{tpu_custom_call.1} parent=0
    #allocation2 [shape = 'u8[8192]{0}', space=vmem, size = 0x2000, scoped, tag = 'input window, operand 0, single buffered']
    #allocation3 [shape = 's32[1]{0}', space=sflag, size = 0x4, scoped, tag = 'scoped memory for tpu_custom_call.1']
    #allocation4 [shape = 's32[1]{0}', space=sflag, size = 0x4, scoped, tag = 'scoped memory for tpu_custom_call.1']
    #allocation5 [shape = 'u8[512]{0}', space=vmem, size = 0x400, scoped, tag = 'output window, operand 0, single buffered']
    %8 = vsyncpa [#allocation3], 0
    %9 = vsyncpa [#allocation4], 0
    // Predicated region
    $region2: #{tpu_custom_call.1} parent=1 // pred_check
      _
    $region3: #{tpu_custom_call.1} parent=1 // pred_check_branch
      %11 = sbr.rel (0) target = $region5
    $region4: #{tpu_custom_call.1} parent=1 // pred_region
      %s13 = ssub.s32 256, 256
      %14 = vsyncadd [#allocation3], %s13
      %s15 = sshll.u32 [#allocation2], 4
      %s16 = int_to_ptr.vmem [resolvable:$true] %s15
      %21 = dma.hbm_to_vmem [thread:$0]  %s0, 256, %s16, [#allocation3], 128, 128, 8
    $region5: #{tpu_custom_call.1} parent=1 // pred_fallthru
      _
    // Predicated region
    $region6: #{tpu_custom_call.1} parent=1 // pred_check
      _
    $region7: #{tpu_custom_call.1} parent=1 // pred_check_branch
      %23 = sbr.rel (0) target = $region9
    $region8: #{tpu_custom_call.1} parent=1 // pred_region
      _
    $region9: #{tpu_custom_call.1} parent=1 // pred_fallthru
      _
    // Predicated region
    $region10: #{tpu_custom_call.1} parent=1 // pred_check
      _
    $region11: #{tpu_custom_call.1} parent=1 // pred_check_branch
      %25 = sbr.rel (0) target = $region13
    $region12: #{tpu_custom_call.1} parent=1 // pred_region
      _
    $region13: #{tpu_custom_call.1} parent=1 // pred_fallthru
      _
    // Predicated region
    $region14: #{tpu_custom_call.1} parent=1 // pred_check
      _
    $region15: #{tpu_custom_call.1} parent=1 // pred_check_branch
      %27 = sbr.rel (0) target = $region17
    $region16: #{tpu_custom_call.1} parent=1 // pred_region
      %28 = dma.done [#allocation3], 256
    $region17: #{tpu_custom_call.1} parent=1 // pred_fallthru
      _
    %v29 = vld [vmem:[#allocation2] sm:$0xff]
    %v30 = vld [vmem:[#allocation2 + $0x8] sm:$0xff]
    %v31 = vld [vmem:[%s1] sm:$0xff]
    %v32 = vld [vmem:[%s1 + $0x8] sm:$0xff]
    %v33 = vld [vmem:[%s2] sm:$0xff]
    %v34 = vld [vmem:[%s2 + $0x8] sm:$0xff]
    %36 = vset.pattern.permute.xlu0 0
    %37 = vperm.xlu0 %36, %v33
    %v38 = vpop.permute.xlu0 %37
    %41 = vset.pattern.permute.xlu0 0
    %42 = vperm.xlu0 %41, %v34
    %v43 = vpop.permute.xlu0 %42
    %vm45 = vcmask 130048
    %v47 = vsel %vm45, %v31, 0
    %v50 = vsel %vm45, %v32, 0
    %52 = vmatprep.subr.mxu0 0.0
    %53 = vmatpush1.msra.mxu0 %v29
    %54 = vmatprep.subr.mxu0 0.0
    %55 = vmatpush1.msra.mxu0 %v30
    %56 = vmatprep.subr.mxu0 0.0
    %57 = vmatpush1.msra.mxu0 0.0
    %58 = vmatprep.subr.mxu0 0.0
    %59 = vmatpush1.msra.mxu0 0.0
    %60 = vmatprep.subr.mxu0 0.0
    %61 = vmatpush1.msra.mxu0 0.0
    %62 = vmatprep.subr.mxu0 0.0
    %63 = vmatpush1.msra.mxu0 0.0
    %64 = vmatprep.subr.mxu0 0.0
    %65 = vmatpush1.msra.mxu0 0.0
    %66 = vmatprep.subr.mxu0 0.0
    %67 = vmatpush1.msra.mxu0 0.0
    %68 = vmatprep.subr.mxu0 0.0
    %69 = vmatpush1.msra.mxu0 0.0
    %70 = vmatprep.subr.mxu0 0.0
    %71 = vmatpush1.msra.mxu0 0.0
    %72 = vmatprep.subr.mxu0 0.0
    %73 = vmatpush1.msra.mxu0 0.0
    %74 = vmatprep.subr.mxu0 0.0
    %75 = vmatpush1.msra.mxu0 0.0
    %76 = vmatprep.subr.mxu0 0.0
    %77 = vmatpush1.msra.mxu0 0.0
    %78 = vmatprep.subr.mxu0 0.0
    %79 = vmatpush1.msra.mxu0 0.0
    %80 = vmatprep.subr.mxu0 0.0
    %81 = vmatpush1.msra.mxu0 0.0
    %82 = vmatprep.subr.mxu0 0.0
    %83 = vmatpush1.msra.mxu0 0.0
    %84 = vmatprep.subr.mxu0 0.0
    %85 = vmatpush1.msra.mxu0 0.0
    %86 = vmatprep.subr.mxu0 0.0
    %87 = vmatpush1.msra.mxu0 0.0
    %88 = vmatprep.subr.mxu0 0.0
    %89 = vmatpush1.msra.mxu0 0.0
    %90 = vmatprep.subr.mxu0 0.0
    %91 = vmatpush1.msra.mxu0 0.0
    %92 = vmatprep.subr.mxu0 0.0
    %93 = vmatpush1.msra.mxu0 0.0
    %94 = vmatprep.subr.mxu0 0.0
    %95 = vmatpush1.msra.mxu0 0.0
    %96 = vmatprep.subr.mxu0 0.0
    %97 = vmatpush1.msra.mxu0 0.0
    %98 = vmatprep.subr.mxu0 0.0
    %99 = vmatpush1.msra.mxu0 0.0
    %100 = vmatprep.subr.mxu0 0.0
    %101 = vmatpush1.msra.mxu0 0.0
    %102 = vmatprep.subr.mxu0 0.0
    %103 = vmatpush1.msra.mxu0 0.0
    %104 = vmatprep.subr.mxu0 0.0
    %105 = vmatpush1.msra.mxu0 0.0
    %106 = vmatprep.subr.mxu0 0.0
    %107 = vmatpush1.msra.mxu0 0.0
    %108 = vmatprep.subr.mxu0 0.0
    %109 = vmatpush1.msra.mxu0 0.0
    %110 = vmatprep.subr.mxu0 0.0
    %111 = vmatpush1.msra.mxu0 0.0
    %112 = vmatprep.subr.mxu0 0.0
    %113 = vmatpush1.msra.mxu0 0.0
    %114 = vmatprep.subr.mxu0 0.0
    %115 = vmatpush1.msra.mxu0 0.0
    %116 = vmatprep.mubr.f32.mxu0 0.0
    %117 = vmatmul.mubr.f32.gmra.mrb[0].mxu0 %v47
    %v118 = vpop.f32.mrb[0].mxu0
    %v119 = vadd.f32 %v38, %v118
    %v120 = vpop.f32.mrb[0].mxu0
    %121 = vmatprep.mubr.f32.mxu0 0.0
    %122 = vmatmul.mubr.f32.gmra.mrb[0].mxu0 %v50
    %v123 = vpop.f32.mrb[0].mxu0
    %v124 = vadd.f32 %v43, %v123
    %v125 = vpop.f32.mrb[0].mxu0
    %126 = vdwg.mxu0
    %v127 = vmax.f32 %v119, 0.0
    %v128 = vmax.f32 %v124, 0.0
    %s129 = scalar_lea.vmem %s1, 16
    %v130 = vld [vmem:[%s129] sm:$0xff]
    %v131 = vld [vmem:[%s129 + $0x8] sm:$0xff]
    %s132 = scalar_lea.vmem %s2, 16
    %v133 = vld [vmem:[%s132] sm:$0xff]
    %v134 = vld [vmem:[%s132 + $0x8] sm:$0xff]
    %136 = vset.pattern.permute.xlu0 0
    %137 = vperm.xlu0 %136, %v133
    %v138 = vpop.permute.xlu0 %137
    %141 = vset.pattern.permute.xlu0 0
    %142 = vperm.xlu0 %141, %v134
    %v143 = vpop.permute.xlu0 %142
    %v146 = vsel %vm45, %v130, 0
    %v149 = vsel %vm45, %v131, 0
    %151 = vmatprep.subr.mxu0 0.0
    %152 = vmatpush1.msra.mxu0 %v127
    %153 = vmatprep.subr.mxu0 0.0
    %154 = vmatpush1.msra.mxu0 %v128
    %155 = vmatprep.subr.mxu0 0.0
    %156 = vmatpush1.msra.mxu0 0.0
    %157 = vmatprep.subr.mxu0 0.0
    %158 = vmatpush1.msra.mxu0 0.0
    %159 = vmatprep.subr.mxu0 0.0
    %160 = vmatpush1.msra.mxu0 0.0
    %161 = vmatprep.subr.mxu0 0.0
    %162 = vmatpush1.msra.mxu0 0.0
    %163 = vmatprep.subr.mxu0 0.0
    %164 = vmatpush1.msra.mxu0 0.0
    %165 = vmatprep.subr.mxu0 0.0
    %166 = vmatpush1.msra.mxu0 0.0
    %167 = vmatprep.subr.mxu0 0.0
    %168 = vmatpush1.msra.mxu0 0.0
    %169 = vmatprep.subr.mxu0 0.0
    %170 = vmatpush1.msra.mxu0 0.0
    %171 = vmatprep.subr.mxu0 0.0
    %172 = vmatpush1.msra.mxu0 0.0
    %173 = vmatprep.subr.mxu0 0.0
    %174 = vmatpush1.msra.mxu0 0.0
    %175 = vmatprep.subr.mxu0 0.0
    %176 = vmatpush1.msra.mxu0 0.0
    %177 = vmatprep.subr.mxu0 0.0
    %178 = vmatpush1.msra.mxu0 0.0
    %179 = vmatprep.subr.mxu0 0.0
    %180 = vmatpush1.msra.mxu0 0.0
    %181 = vmatprep.subr.mxu0 0.0
    %182 = vmatpush1.msra.mxu0 0.0
    %183 = vmatprep.subr.mxu0 0.0
    %184 = vmatpush1.msra.mxu0 0.0
    %185 = vmatprep.subr.mxu0 0.0
    %186 = vmatpush1.msra.mxu0 0.0
    %187 = vmatprep.subr.mxu0 0.0
    %188 = vmatpush1.msra.mxu0 0.0
    %189 = vmatprep.subr.mxu0 0.0
    %190 = vmatpush1.msra.mxu0 0.0
    %191 = vmatprep.subr.mxu0 0.0
    %192 = vmatpush1.msra.mxu0 0.0
    %193 = vmatprep.subr.mxu0 0.0
    %194 = vmatpush1.msra.mxu0 0.0
    %195 = vmatprep.subr.mxu0 0.0
    %196 = vmatpush1.msra.mxu0 0.0
    %197 = vmatprep.subr.mxu0 0.0
    %198 = vmatpush1.msra.mxu0 0.0
    %199 = vmatprep.subr.mxu0 0.0
    %200 = vmatpush1.msra.mxu0 0.0
    %201 = vmatprep.subr.mxu0 0.0
    %202 = vmatpush1.msra.mxu0 0.0
    %203 = vmatprep.subr.mxu0 0.0
    %204 = vmatpush1.msra.mxu0 0.0
    %205 = vmatprep.subr.mxu0 0.0
    %206 = vmatpush1.msra.mxu0 0.0
    %207 = vmatprep.subr.mxu0 0.0
    %208 = vmatpush1.msra.mxu0 0.0
    %209 = vmatprep.subr.mxu0 0.0
    %210 = vmatpush1.msra.mxu0 0.0
    %211 = vmatprep.subr.mxu0 0.0
    %212 = vmatpush1.msra.mxu0 0.0
    %213 = vmatprep.subr.mxu0 0.0
    %214 = vmatpush1.msra.mxu0 0.0
    %215 = vmatprep.mubr.f32.mxu0 0.0
    %216 = vmatmul.mubr.f32.gmra.mrb[0].mxu0 %v146
    %v217 = vpop.f32.mrb[0].mxu0
    %v218 = vadd.f32 %v138, %v217
    %v219 = vpop.f32.mrb[0].mxu0
    %220 = vmatprep.mubr.f32.mxu0 0.0
    %221 = vmatmul.mubr.f32.gmra.mrb[0].mxu0 %v149
    %v222 = vpop.f32.mrb[0].mxu0
    %v223 = vadd.f32 %v143, %v222
    %v224 = vpop.f32.mrb[0].mxu0
    %225 = vdwg.mxu0
    %v226 = vmax.f32 %v218, 0.0
    %v227 = vmax.f32 %v223, 0.0
    %s228 = scalar_lea.vmem %s1, 32
    %v229 = vld [vmem:[%s228] sm:$0xff]
    %v230 = vld [vmem:[%s228 + $0x8] sm:$0xff]
    %s231 = scalar_lea.vmem %s2, 32
    %v232 = vld [vmem:[%s231] sm:$0xff]
    %v233 = vld [vmem:[%s231 + $0x8] sm:$0xff]
    %235 = vset.pattern.permute.xlu0 0
    %236 = vperm.xlu0 %235, %v232
    %v237 = vpop.permute.xlu0 %236
    %240 = vset.pattern.permute.xlu0 0
    %241 = vperm.xlu0 %240, %v233
    %v242 = vpop.permute.xlu0 %241
    %v244 = vsel %vm45, %v229, 0
    %v247 = vsel %vm45, %v230, 0
    %249 = vmatprep.subr.mxu0 0.0
    %250 = vmatpush1.msra.mxu0 %v226
    %251 = vmatprep.subr.mxu0 0.0
    %252 = vmatpush1.msra.mxu0 %v227
    %253 = vmatprep.subr.mxu0 0.0
    %254 = vmatpush1.msra.mxu0 0.0
    %255 = vmatprep.subr.mxu0 0.0
    %256 = vmatpush1.msra.mxu0 0.0
    %257 = vmatprep.subr.mxu0 0.0
    %258 = vmatpush1.msra.mxu0 0.0
    %259 = vmatprep.subr.mxu0 0.0
    %260 = vmatpush1.msra.mxu0 0.0
    %261 = vmatprep.subr.mxu0 0.0
    %262 = vmatpush1.msra.mxu0 0.0
    %263 = vmatprep.subr.mxu0 0.0
    %264 = vmatpush1.msra.mxu0 0.0
    %265 = vmatprep.subr.mxu0 0.0
    %266 = vmatpush1.msra.mxu0 0.0
    %267 = vmatprep.subr.mxu0 0.0
    %268 = vmatpush1.msra.mxu0 0.0
    %269 = vmatprep.subr.mxu0 0.0
    %270 = vmatpush1.msra.mxu0 0.0
    %271 = vmatprep.subr.mxu0 0.0
    %272 = vmatpush1.msra.mxu0 0.0
    %273 = vmatprep.subr.mxu0 0.0
    %274 = vmatpush1.msra.mxu0 0.0
    %275 = vmatprep.subr.mxu0 0.0
    %276 = vmatpush1.msra.mxu0 0.0
    %277 = vmatprep.subr.mxu0 0.0
    %278 = vmatpush1.msra.mxu0 0.0
    %279 = vmatprep.subr.mxu0 0.0
    %280 = vmatpush1.msra.mxu0 0.0
    %281 = vmatprep.subr.mxu0 0.0
    %282 = vmatpush1.msra.mxu0 0.0
    %283 = vmatprep.subr.mxu0 0.0
    %284 = vmatpush1.msra.mxu0 0.0
    %285 = vmatprep.subr.mxu0 0.0
    %286 = vmatpush1.msra.mxu0 0.0
    %287 = vmatprep.subr.mxu0 0.0
    %288 = vmatpush1.msra.mxu0 0.0
    %289 = vmatprep.subr.mxu0 0.0
    %290 = vmatpush1.msra.mxu0 0.0
    %291 = vmatprep.subr.mxu0 0.0
    %292 = vmatpush1.msra.mxu0 0.0
    %293 = vmatprep.subr.mxu0 0.0
    %294 = vmatpush1.msra.mxu0 0.0
    %295 = vmatprep.subr.mxu0 0.0
    %296 = vmatpush1.msra.mxu0 0.0
    %297 = vmatprep.subr.mxu0 0.0
    %298 = vmatpush1.msra.mxu0 0.0
    %299 = vmatprep.subr.mxu0 0.0
    %300 = vmatpush1.msra.mxu0 0.0
    %301 = vmatprep.subr.mxu0 0.0
    %302 = vmatpush1.msra.mxu0 0.0
    %303 = vmatprep.subr.mxu0 0.0
    %304 = vmatpush1.msra.mxu0 0.0
    %305 = vmatprep.subr.mxu0 0.0
    %306 = vmatpush1.msra.mxu0 0.0
    %307 = vmatprep.subr.mxu0 0.0
    %308 = vmatpush1.msra.mxu0 0.0
    %309 = vmatprep.subr.mxu0 0.0
    %310 = vmatpush1.msra.mxu0 0.0
    %311 = vmatprep.subr.mxu0 0.0
    %312 = vmatpush1.msra.mxu0 0.0
    %313 = vmatprep.mubr.f32.mxu0 0.0
    %314 = vmatmul.mubr.f32.gmra.mrb[0].mxu0 %v244
    %v315 = vpop.f32.mrb[0].mxu0
    %v316 = vadd.f32 %v237, %v315
    %v317 = vpop.f32.mrb[0].mxu0
    %318 = vmatprep.mubr.f32.mxu0 0.0
    %319 = vmatmul.mubr.f32.gmra.mrb[0].mxu0 %v247
    %v320 = vpop.f32.mrb[0].mxu0
    %v321 = vpop.f32.mrb[0].mxu0
    %322 = vdwg.mxu0
    %323 = vst [vmem:[#allocation5] sm:$0x1] %v316
    // Predicated region
    $region18: #{tpu_custom_call.1} parent=1 // pred_check
      _
    $region19: #{tpu_custom_call.1} parent=1 // pred_check_branch
      %325 = sbr.rel (0) target = $region21
    $region20: #{tpu_custom_call.1} parent=1 // pred_region
      %s327 = ssub.s32 16, 16
      %328 = vsyncadd [#allocation4], %s327
      %s330 = sshll.u32 [#allocation5], 4
      %s331 = int_to_ptr.vmem [resolvable:$true] %s330
      %333 = dma.vmem_to_hbm [thread:$0]  %s331, 16, %s3, [#allocation4]
    $region21: #{tpu_custom_call.1} parent=1 // pred_fallthru
      _
    // Predicated region
    $region22: #{tpu_custom_call.1} parent=1 // pred_check
      _
    $region23: #{tpu_custom_call.1} parent=1 // pred_check_branch
      %335 = sbr.rel (0) target = $region25
    $region24: #{tpu_custom_call.1} parent=1 // pred_region
      %336 = dma.done [#allocation4], 16
    $region25: #{tpu_custom_call.1} parent=1 // pred_fallthru
      _
    %337 = vsyncpa [#allocation3], 1
    %338 = vsyncpa [#allocation4], 1

</llo_original>
